<compile_context>
chip_gen: v6e
topology: v6e:2x2x1
jax: 0.10.0
libtpu: 0.0.40
codegen_flags: <defaults>
</compile_context>

<pallas_src>
import jax
import jax.numpy as jnp
import numpy as np
from jax.experimental import pallas as pl
from jax.experimental.pallas import tpu as pltpu


def _round_up(x, m):
    return ((x + m - 1) // m) * m


def _pick_tile(size, candidates):
    """Largest candidate that evenly divides `size` (size is already padded)."""
    for c in candidates:
        if size % c == 0:
            return c
    return size


def _rgcn_matmul_kernel(a_ref, w_ref, bias_ref, out_ref):
    """out[i, j] (+)= A[i, k] @ W[k, j]; bias + ReLU fused at the last K step."""
    k = pl.program_id(2)

    @pl.when(k == 0)
    def _():
        out_ref[...] = jnp.zeros_like(out_ref)

    out_ref[...] += jnp.dot(a_ref[...], w_ref[...],
                            preferred_element_type=jnp.float32)

    @pl.when(k == pl.num_programs(2) - 1)
    def _():
        out_ref[...] = jnp.maximum(out_ref[...] + bias_ref[...], 0.0)


def rgcn_layer0_pallas(adj, w2, bias):
    """adj: (N, K) flattened adjacency (K = B*N or R*N), w2: (K, H) flattened
    basis/relation weights, bias: (H,).  Returns (N, H) f32 = relu(adj@w2 + b)."""
    N, K = adj.shape
    H = w2.shape[-1]

    # Lane-dense output: pad H up to a multiple of 128, tile at <= 512 lanes.
    Hp = _round_up(H, 128)
    tn = _pick_tile(Hp, (512, 256, 128))
    # dst tile (output rows / A sublanes): multiple of 8, <= 256.
    Np = _round_up(N, 8)
    tm = _pick_tile(Np, (256, 128, 64, 32, 16, 8))
    # contraction tile (A lanes / W sublanes): multiple of 128, <= 1024.
    Kp = _round_up(K, 128)
    tk = _pick_tile(Kp, (1024, 512, 256, 128))
    # VMEM (double-buffered, bf16 operands, f32 out) at the caps above:
    #   2*tm*tk*2 + 2*tk*tn*2 + 2*tm*tn*4 + 2*tn*4  ~= 4 MiB  -> safe on
    # v5e/v6e/v7x default scoped limits.

    a = jnp.pad(adj, ((0, Np - N), (0, Kp - K))).astype(jnp.bfloat16)
    w = jnp.pad(w2, ((0, Kp - K), (0, Hp - H))).astype(jnp.bfloat16)
    b = jnp.pad(bias.astype(jnp.float32), (0, Hp - H)).reshape(1, Hp)

    grid = (Np // tm, Hp // tn, Kp // tk)
    cost = pl.CostEstimate(
        flops=2 * Np * Kp * Hp,
        transcendentals=0,
        bytes_accessed=Np * Kp * 2 + Kp * Hp * 2 + Np * Hp * 4 + Hp * 4,
    )

    out = pl.pallas_call(
        _rgcn_matmul_kernel,
        out_shape=jax.ShapeDtypeStruct((Np, Hp), jnp.float32),
        grid_spec=pltpu.PrefetchScalarGridSpec(
            num_scalar_prefetch=0,
            grid=grid,                                           # (dst, H, K)
            in_specs=[
                pl.BlockSpec((tm, tk), lambda i, j, k: (i, k)),  # A tile
                pl.BlockSpec((tk, tn), lambda i, j, k: (k, j)),  # W tile
                pl.BlockSpec((1, tn), lambda i, j, k: (0, j)),   # bias row
            ],
            out_specs=pl.BlockSpec((tm, tn), lambda i, j, k: (i, j)),
        ),
        compiler_params=pltpu.CompilerParams(
            dimension_semantics=("parallel", "parallel", "arbitrary")),
        cost_estimate=cost,
    )(a, w, b)
    return out[:N, :H]


def egl_rgcn_model_layer1_forward(weight, w_comp, h_bias,
                                  src, dst, etype, edge_norm,
                                  num_nodes, num_rels):
    """Forward pass equivalent of EGLRGCNModelLayer1.forward (eval-mode dropout).

    weight: (num_bases, in_feat, out_feat) with in_feat == num_nodes (layer 0
    treats inputs as one-hot node ids).  w_comp: (num_rels, num_bases) or None.
    """
    num_bases, in_feat, out_feat = weight.shape
    norm = edge_norm.reshape(-1).astype(jnp.float32)
    src = src.astype(jnp.int32)
    dst = dst.astype(jnp.int32)
    etype = etype.astype(jnp.int32)

    # Dense flattened adjacency with the edge norm folded in (XLA scatter glue).
    # TODO(synk): for large sparse graphs (|E| << B*N^2) replace this dense
    # adjacency with a scalar-prefetched edge/segment-sum Pallas kernel.
    if (w_comp is not None) and (num_bases < num_rels):
        # Fold the basis composition into the adjacency; contraction over
        # (basis, src) instead of (rel, src):  K = num_bases * N.
        coeff = w_comp[etype] * norm[:, None]                        # (E, B)
        rows = jnp.broadcast_to(dst[:, None], coeff.shape)
        cols = (src[:, None]
                + jnp.arange(num_bases, dtype=jnp.int32)[None, :] * num_nodes)
        adj = jnp.zeros((num_nodes, num_bases * num_nodes), jnp.float32)
        adj = adj.at[rows, cols].add(coeff)
        w2 = weight.reshape(num_bases * in_feat, out_feat)
    else:
        # No basis decomposition (PyTorch clamps num_bases to num_rels here).
        cols = etype * num_nodes + src
        adj = jnp.zeros((num_nodes, num_rels * num_nodes), jnp.float32)
        adj = adj.at[dst, cols].add(norm)
        w2 = weight[:num_rels].reshape(num_rels * in_feat, out_feat)

    out = rgcn_layer0_pallas(adj, w2, h_bias)
    # nn.Dropout: deterministic eval-mode identity (dropout=0.0 in this config).
    return out


if __name__ == "__main__":
    # Small shapes consistent with the module (layer_type=0: in_feat == num_nodes).
    num_nodes, hidden_dim, num_rels, num_bases, num_edges = 64, 32, 4, 2, 128
    key = jax.random.PRNGKey(0)
    k_w, k_c, k_s, k_d, k_t = jax.random.split(key, 5)

    # Deterministic xavier_uniform-style init (gain = sqrt(2) for relu).
    gain = float(np.sqrt(2.0))
    bound_w = gain * np.sqrt(6.0 / (num_nodes + hidden_dim))
    weight = jax.random.uniform(k_w, (num_bases, num_nodes, hidden_dim),
                                jnp.float32, -bound_w, bound_w)
    bound_c = gain * np.sqrt(6.0 / (num_rels + num_bases))
    w_comp = jax.random.uniform(k_c, (num_rels, num_bases),
                                jnp.float32, -bound_c, bound_c)
    h_bias = jnp.zeros((hidden_dim,), jnp.float32)

    # Deterministic synthetic graph.
    src = jax.random.randint(k_s, (num_edges,), 0, num_nodes, dtype=jnp.int32)
    dst = jax.random.randint(k_d, (num_edges,), 0, num_nodes, dtype=jnp.int32)
    etype = jax.random.randint(k_t, (num_edges,), 0, num_rels, dtype=jnp.int32)
    in_deg = jnp.zeros((num_nodes,), jnp.float32).at[dst].add(1.0)
    edge_norm = (1.0 / jnp.maximum(in_deg[dst], 1.0)).reshape(num_edges, 1)

    fwd = jax.jit(egl_rgcn_model_layer1_forward,
                  static_argnames=("num_nodes", "num_rels"))
    out = fwd(weight, w_comp, h_bias, src, dst, etype, edge_norm,
              num_nodes=num_nodes, num_rels=num_rels)
    out = jax.block_until_ready(out)

    # --- Semantic reference (pure f32 scatter-add, module's op order) -------
    # Loose tolerance: the kernel feeds bf16 operands to the MXU (f32 accumulate)
    # and folds w_comp into the adjacency rather than the weights.
    w_rel = jnp.matmul(w_comp, weight.reshape(num_bases, -1)).reshape(
        num_rels, num_nodes, hidden_dim)
    msgs = w_rel[etype, src, :] * edge_norm
    ref_f32 = jnp.zeros((num_nodes, hidden_dim), jnp.float32).at[dst].add(msgs)
    ref_f32 = jnp.maximum(ref_f32 + h_bias[None, :], 0.0)
    np.testing.assert_allclose(np.asarray(out), np.asarray(ref_f32),
                               rtol=2e-2, atol=2e-2)

    # --- Tight reference with bf16-quantized kernel operands ----------------
    # (isolates kernel correctness from bf16 input rounding).
    coeff = w_comp[etype] * edge_norm
    rows = jnp.broadcast_to(dst[:, None], coeff.shape)
    cols = src[:, None] + jnp.arange(num_bases)[None, :] * num_nodes
    adj = jnp.zeros((num_nodes, num_bases * num_nodes), jnp.float32
                    ).at[rows, cols].add(coeff)
    a_q = adj.astype(jnp.bfloat16).astype(jnp.float32)
    w_q = weight.reshape(num_bases * num_nodes, hidden_dim).astype(
        jnp.bfloat16).astype(jnp.float32)
    ref_q = jnp.maximum(a_q @ w_q + h_bias[None, :], 0.0)
    np.testing.assert_allclose(np.asarray(out), np.asarray(ref_q),
                               rtol=1e-4, atol=1e-4)

    print("KERNEL_OK")
</pallas_src>

<mosaic_0001>
module attributes {stable_mosaic.version = 11 : i64} {
  func.func private @main(%arg0: i32) attributes {dimension_semantics = [#tpu.dimension_semantics<core_parallel>], iteration_bounds = array<i64: 2>, tpu.core_type = #tpu.core_type<sc_scalar_subcore>, window_params = []} {
    return
  }
}

module attributes {stable_mosaic.version = 11 : i64} {
  func.func private @main(%arg0: i32) attributes {dimension_semantics = [#tpu.dimension_semantics<core_parallel>], iteration_bounds = array<i64: 2>, tpu.core_type = #tpu.core_type<sc_scalar_subcore>, window_params = []} {
    return
  }
}

module attributes {stable_mosaic.version = 11 : i64} {
  func.func @_rgcn_matmul_kernel(%arg0: i32, %arg1: i32, %arg2: i32, %arg3: memref<64x128xbf16, #tpu.memory_space<vmem>>, %arg4: memref<128x128xbf16, #tpu.memory_space<vmem>>, %arg5: memref<1x128xf32, #tpu.memory_space<vmem>>, %arg6: memref<64x128xf32, #tpu.memory_space<vmem>>) attributes {dimension_semantics = [#tpu.dimension_semantics<parallel>, #tpu.dimension_semantics<parallel>, #tpu.dimension_semantics<arbitrary>], iteration_bounds = array<i64: 1, 1, 1>, scalar_prefetch = 0 : i64, scratch_operands = 0 : i64, tpu.core_type = #tpu.core_type<tc>, window_params = [{transform_indices = @transform_0, window_bounds = array<i64: 64, 128>}, {transform_indices = @transform_1, window_bounds = array<i64: 128, 128>}, {transform_indices = @transform_2, window_bounds = array<i64: 1, 128>}, {transform_indices = @transform_3, window_bounds = array<i64: 64, 128>}]} {
    %c0_i32 = arith.constant 0 : i32
    %0 = arith.cmpi eq, %arg2, %c0_i32 : i32
    %1 = arith.extui %0 : i1 to i32
    %c0_i32_0 = arith.constant 0 : i32
    %2 = arith.cmpi ne, %1, %c0_i32_0 : i32
    scf.if %2 {
      %cst_10 = arith.constant 0.000000e+00 : f32
      %12 = vector.broadcast %cst_10 : f32 to vector<64x128xf32>
      %c0_11 = arith.constant 0 : index
      %c0_12 = arith.constant 0 : index
      %13 = vector.load %arg6[%c0_11, %c0_12] : memref<64x128xf32, #tpu.memory_space<vmem>>, vector<64x128xf32>
      tpu.vector_store %arg6[%c0_11, %c0_12], %12 {strides = array<i32>} : memref<64x128xf32, #tpu.memory_space<vmem>>, vector<64x128xf32>,
    } else {
    }
    %c0 = arith.constant 0 : index
    %c0_1 = arith.constant 0 : index
    %3 = vector.load %arg6[%c0, %c0_1] : memref<64x128xf32, #tpu.memory_space<vmem>>, vector<64x128xf32>
    %c0_2 = arith.constant 0 : index
    %c0_3 = arith.constant 0 : index
    %4 = vector.load %arg3[%c0_2, %c0_3] : memref<64x128xbf16, #tpu.memory_space<vmem>>, vector<64x128xbf16>
    %c0_4 = arith.constant 0 : index
    %c0_5 = arith.constant 0 : index
    %5 = vector.load %arg4[%c0_4, %c0_5] : memref<128x128xbf16, #tpu.memory_space<vmem>>, vector<128x128xbf16>
    %cst = arith.constant dense<0.000000e+00> : vector<64x128xf32>
    %6 = tpu.matmul %4, %5, %cst {dimension_numbers = #tpu.dot_dimension_numbers<[1], [0], [0], [1], [0, 0, 1, 1], [], []>} : vector<64x128xbf16>, vector<128x128xbf16>, vector<64x128xf32> -> vector<64x128xf32>
    %7 = arith.addf %3, %6 : vector<64x128xf32>
    %c0_6 = arith.constant 0 : index
    %c0_7 = arith.constant 0 : index
    %8 = vector.load %arg6[%c0_6, %c0_7] : memref<64x128xf32, #tpu.memory_space<vmem>>, vector<64x128xf32>
    tpu.vector_store %arg6[%c0_6, %c0_7], %7 {strides = array<i32>} : memref<64x128xf32, #tpu.memory_space<vmem>>, vector<64x128xf32>,
    %c0_i32_8 = arith.constant 0 : i32
    %9 = arith.cmpi eq, %arg2, %c0_i32_8 : i32
    %10 = arith.extui %9 : i1 to i32
    %c0_i32_9 = arith.constant 0 : i32
    %11 = arith.cmpi ne, %10, %c0_i32_9 : i32
    scf.if %11 {
      %c0_10 = arith.constant 0 : index
      %c0_11 = arith.constant 0 : index
      %12 = vector.load %arg6[%c0_10, %c0_11] : memref<64x128xf32, #tpu.memory_space<vmem>>, vector<64x128xf32>
      %c0_12 = arith.constant 0 : index
      %c0_13 = arith.constant 0 : index
      %13 = vector.load %arg5[%c0_12, %c0_13] : memref<1x128xf32, #tpu.memory_space<vmem>>, vector<1x128xf32>
      %14 = vector.broadcast %13 : vector<1x128xf32> to vector<64x128xf32>
      %15 = arith.addf %12, %14 : vector<64x128xf32>
      %cst_14 = arith.constant 0.000000e+00 : f32
      %16 = vector.broadcast %cst_14 : f32 to vector<64x128xf32>
      %17 = arith.maximumf %15, %16 : vector<64x128xf32>
      %c0_15 = arith.constant 0 : index
      %c0_16 = arith.constant 0 : index
      %18 = vector.load %arg6[%c0_15, %c0_16] : memref<64x128xf32, #tpu.memory_space<vmem>>, vector<64x128xf32>
      tpu.vector_store %arg6[%c0_15, %c0_16], %17 {strides = array<i32>} : memref<64x128xf32, #tpu.memory_space<vmem>>, vector<64x128xf32>,
    } else {
    }
    return
  }
  func.func @transform_0(%arg0: i32, %arg1: i32, %arg2: i32) -> (i32, i32) {
    %c0_i32 = arith.constant 0 : i32
    return %arg0, %arg2 : i32, i32
  }
  func.func @transform_1(%arg0: i32, %arg1: i32, %arg2: i32) -> (i32, i32) {
    %c0_i32 = arith.constant 0 : i32
    return %arg2, %arg1 : i32, i32
  }
  func.func @transform_2(%arg0: i32, %arg1: i32, %arg2: i32) -> (i32, i32) {
    %c0_i32 = arith.constant 0 : i32
    %c0_i32_0 = arith.constant 0 : i32
    return %c0_i32, %arg1 : i32, i32
  }
  func.func @transform_3(%arg0: i32, %arg1: i32, %arg2: i32) -> (i32, i32) {
    %c0_i32 = arith.constant 0 : i32
    return %arg0, %arg1 : i32, i32
  }
}

</mosaic_0001>

<llo_original>
// kernel: egl_rgcn_model_layer1_forward.1
$region0: #{egl_rgcn_model_layer1_forward.1}
  #allocation0 [shape = 'u32[]', space=smem, size = 0x4, offset = 0x4, fixed_abs, tag = 'smem constant byte address 0x4 - core index']
  #allocation1 [shape = 'u32[144,128]{1,0:T(1,128)}', space=vmem, size = 0x12000, scoped, tag = 'internal scratch']
  %s0 = inlined_call_operand.vmem [shape: bf16[64,128], index: 0, kind: input, shape index: {}]
  %s1 = inlined_call_operand.vmem [shape: bf16[128,128], index: 1, kind: input, shape index: {}]
  %s2 = inlined_call_operand.vmem [shape: f32[1,128], index: 2, kind: input, shape index: {}]
  %s3 = inlined_call_operand.vmem [shape: f32[64,128], index: 3, kind: output, shape index: {}]
  %s4 = sld [smem:[#allocation0]]
  $region30: #{egl_rgcn_model_layer1_forward.1} parent=0
    _
  %s6 = ssub.s32 1, %s4
  %s7 = scalar_select 0, %s6, %s4
  // Predicated region
  $region2: #{egl_rgcn_model_layer1_forward.1} parent=0 // pred_check
    _
  $region3: #{egl_rgcn_model_layer1_forward.1} parent=0 // pred_check_branch
    %9 = sbr.rel (0) target = $region5
  $region4: #{egl_rgcn_model_layer1_forward.1} parent=0 // pred_region
    _
  $region5: #{egl_rgcn_model_layer1_forward.1} parent=0 // pred_fallthru
    _
  // Predicated region
  $region6: #{egl_rgcn_model_layer1_forward.1} parent=0 // pred_check
    _
  $region7: #{egl_rgcn_model_layer1_forward.1} parent=0 // pred_check_branch
    %11 = sbr.rel (0) target = $region9
  $region8: #{egl_rgcn_model_layer1_forward.1} parent=0 // pred_region
    _
  $region9: #{egl_rgcn_model_layer1_forward.1} parent=0 // pred_fallthru
    _
  // Predicated region
  $region10: #{egl_rgcn_model_layer1_forward.1} parent=0 // pred_check
    _
  $region11: #{egl_rgcn_model_layer1_forward.1} parent=0 // pred_check_branch
    %13 = sbr.rel (0) target = $region13
  $region12: #{egl_rgcn_model_layer1_forward.1} parent=0 // pred_region
    _
  $region13: #{egl_rgcn_model_layer1_forward.1} parent=0 // pred_fallthru
    _
  %p15 = scmp.eq.s32.totalorder 0, 0
  // Predicated region
  $region14: #{egl_rgcn_model_layer1_forward.1} parent=0 // pred_check
    %p16 = pneg %p15
  $region15: #{egl_rgcn_model_layer1_forward.1} parent=0 // pred_check_branch
    %18 = sbr.rel (%p16) target = $region17
  $region16: #{egl_rgcn_model_layer1_forward.1} parent=0 // pred_region
    %19 = vst [vmem:[%s3] sm:$0xff] 0.0
    %20 = vst [vmem:[%s3 + $0x8] sm:$0xff] 0.0
    %21 = vst [vmem:[%s3 + $0x10] sm:$0xff] 0.0
    %22 = vst [vmem:[%s3 + $0x18] sm:$0xff] 0.0
    %23 = vst [vmem:[%s3 + $0x20] sm:$0xff] 0.0
    %24 = vst [vmem:[%s3 + $0x28] sm:$0xff] 0.0
    %25 = vst [vmem:[%s3 + $0x30] sm:$0xff] 0.0
    %26 = vst [vmem:[%s3 + $0x38] sm:$0xff] 0.0
  $region17: #{egl_rgcn_model_layer1_forward.1} parent=0 // pred_fallthru
    _
  %v27 = vld [vmem:[%s3] sm:$0xff]
  %v28 = vld [vmem:[%s3 + $0x8] sm:$0xff]
  %v29 = vld [vmem:[%s3 + $0x10] sm:$0xff]
  %v30 = vld [vmem:[%s3 + $0x18] sm:$0xff]
  %v31 = vld [vmem:[%s3 + $0x20] sm:$0xff]
  %v32 = vld [vmem:[%s3 + $0x28] sm:$0xff]
  %v33 = vld [vmem:[%s3 + $0x30] sm:$0xff]
  %v34 = vld [vmem:[%s3 + $0x38] sm:$0xff]
  %v35 = vld [vmem:[%s0] sm:$0xf]
  %v36 = vld [vmem:[%s0 + $0x4] sm:$0xf]
  %v37 = vld [vmem:[%s0 + $0x8] sm:$0xf]
  %v38 = vld [vmem:[%s0 + $0xc] sm:$0xf]
  %v39 = vld [vmem:[%s0 + $0x10] sm:$0xf]
  %v40 = vld [vmem:[%s0 + $0x14] sm:$0xf]
  %v41 = vld [vmem:[%s0 + $0x18] sm:$0xf]
  %v42 = vld [vmem:[%s0 + $0x1c] sm:$0xf]
  %v43 = vld [vmem:[%s1] sm:$0xf]
  %v44 = vld [vmem:[%s1 + $0x4] sm:$0xf]
  %v45 = vld [vmem:[%s1 + $0x8] sm:$0xf]
  %v46 = vld [vmem:[%s1 + $0xc] sm:$0xf]
  %v47 = vld [vmem:[%s1 + $0x10] sm:$0xf]
  %v48 = vld [vmem:[%s1 + $0x14] sm:$0xf]
  %v49 = vld [vmem:[%s1 + $0x18] sm:$0xf]
  %v50 = vld [vmem:[%s1 + $0x1c] sm:$0xf]
  %v51 = vld [vmem:[%s1 + $0x20] sm:$0xf]
  %v52 = vld [vmem:[%s1 + $0x24] sm:$0xf]
  %v53 = vld [vmem:[%s1 + $0x28] sm:$0xf]
  %v54 = vld [vmem:[%s1 + $0x2c] sm:$0xf]
  %v55 = vld [vmem:[%s1 + $0x30] sm:$0xf]
  %v56 = vld [vmem:[%s1 + $0x34] sm:$0xf]
  %v57 = vld [vmem:[%s1 + $0x38] sm:$0xf]
  %v58 = vld [vmem:[%s1 + $0x3c] sm:$0xf]
  %v67 = vunpack.c.l.b16 %v35
  %v68 = vunpack.c.l.b16 %v36
  %v69 = vunpack.c.l.b16 %v37
  %v70 = vunpack.c.l.b16 %v38
  %v71 = vunpack.c.l.b16 %v39
  %v72 = vunpack.c.l.b16 %v40
  %v73 = vunpack.c.l.b16 %v41
  %v74 = vunpack.c.l.b16 %v42
  %v75 = vpack.c.b16 %v68, %v67
  %v76 = vpack.c.b16 %v70, %v69
  %v77 = vpack.c.b16 %v72, %v71
  %v78 = vpack.c.b16 %v74, %v73
  %v99 = vunpack.c.l.b16 %v43
  %v100 = vunpack.c.l.b16 %v44
  %v101 = vunpack.c.l.b16 %v45
  %v102 = vunpack.c.l.b16 %v46
  %v103 = vunpack.c.l.b16 %v47
  %v104 = vunpack.c.l.b16 %v48
  %v105 = vunpack.c.l.b16 %v49
  %v106 = vunpack.c.l.b16 %v50
  %v107 = vunpack.c.l.b16 %v51
  %v108 = vunpack.c.l.b16 %v52
  %v109 = vunpack.c.l.b16 %v53
  %v110 = vunpack.c.l.b16 %v54
  %v111 = vunpack.c.l.b16 %v55
  %v112 = vunpack.c.l.b16 %v56
  %v113 = vunpack.c.l.b16 %v57
  %v114 = vunpack.c.l.b16 %v58
  %v115 = vpack.c.b16 %v100, %v99
  %v116 = vpack.c.b16 %v102, %v101
  %v117 = vpack.c.b16 %v104, %v103
  %v118 = vpack.c.b16 %v106, %v105
  %v119 = vpack.c.b16 %v108, %v107
  %v120 = vpack.c.b16 %v110, %v109
  %v121 = vpack.c.b16 %v112, %v111
  %v122 = vpack.c.b16 %v114, %v113
  %131 = vmatprep.subr.bf16.mxu0 0
  %132 = vmatpush1.bf16.msra.mxu0 %v122
  %133 = vmatprep.subr.bf16.mxu0 0
  %134 = vmatpush1.bf16.msra.mxu0 %v121
  %135 = vmatprep.subr.bf16.mxu0 0
  %136 = vmatpush1.bf16.msra.mxu0 %v120
  %137 = vmatprep.subr.bf16.mxu0 0
  %138 = vmatpush1.bf16.msra.mxu0 %v119
  %139 = vmatprep.subr.bf16.mxu0 0
  %140 = vmatpush1.bf16.msra.mxu0 %v118
  %141 = vmatprep.subr.bf16.mxu0 0
  %142 = vmatpush1.bf16.msra.mxu0 %v117
  %143 = vmatprep.subr.bf16.mxu0 0
  %144 = vmatpush1.bf16.msra.mxu0 %v116
  %145 = vmatprep.subr.bf16.mxu0 0
  %146 = vmatpush1.bf16.msra.mxu0 %v115
  %147 = vmatprep.subr.bf16.mxu0 0
  %148 = vmatpush2.bf16.msra.mxu0 0
  %149 = vmatprep.subr.bf16.mxu0 0
  %150 = vmatpush2.bf16.msra.mxu0 0
  %151 = vmatprep.subr.bf16.mxu0 0
  %152 = vmatpush2.bf16.msra.mxu0 0
  %153 = vmatprep.subr.bf16.mxu0 0
  %154 = vmatpush2.bf16.msra.mxu0 0
  %155 = vmatprep.subr.bf16.mxu0 0
  %156 = vmatpush2.bf16.msra.mxu0 0
  %157 = vmatprep.subr.bf16.mxu0 0
  %158 = vmatpush2.bf16.msra.mxu0 0
  %159 = vmatprep.subr.bf16.mxu0 0
  %160 = vmatpush2.bf16.msra.mxu0 0
  %161 = vmatprep.subr.bf16.mxu0 0
  %162 = vmatpush2.bf16.msra.mxu0 0
  %163 = vmatprep.mubr.bf16.mxu0 0
  %164 = vmatmul.mubr.bf16.gmra.mxu0 %v75
  %v165 = vpop.f32.mrf.mxu0
  %v166 = vadd.f32 0.0, %v165
  %v167 = vpop.f32.mrf.mxu0
  %v168 = vpop.f32.mrf.mxu0
  %v169 = vadd.f32 0.0, %v168
  %v170 = vpop.f32.mrf.mxu0
  %171 = vmatprep.mubr.bf16.mxu0 0
  %172 = vmatmul.mubr.bf16.gmra.mxu0 %v76
  %v173 = vpop.f32.mrf.mxu0
  %v174 = vadd.f32 0.0, %v173
  %v175 = vpop.f32.mrf.mxu0
  %v176 = vpop.f32.mrf.mxu0
  %v177 = vadd.f32 0.0, %v176
  %v178 = vpop.f32.mrf.mxu0
  %179 = vmatprep.mubr.bf16.mxu0 0
  %180 = vmatmul.mubr.bf16.gmra.mxu0 %v77
  %v181 = vpop.f32.mrf.mxu0
  %v182 = vadd.f32 0.0, %v181
  %v183 = vpop.f32.mrf.mxu0
  %v184 = vpop.f32.mrf.mxu0
  %v185 = vadd.f32 0.0, %v184
  %v186 = vpop.f32.mrf.mxu0
  %187 = vmatprep.mubr.bf16.mxu0 0
  %188 = vmatmul.mubr.bf16.gmra.mxu0 %v78
  %v189 = vpop.f32.mrf.mxu0
  %v190 = vadd.f32 0.0, %v189
  %v191 = vpop.f32.mrf.mxu0
  %v192 = vpop.f32.mrf.mxu0
  %v193 = vadd.f32 0.0, %v192
  %v194 = vpop.f32.mrf.mxu0
  %195 = vdwg.mxu0
  %v196 = vadd.f32 %v27, %v166
  %v197 = vadd.f32 %v28, %v169
  %v198 = vadd.f32 %v29, %v174
  %v199 = vadd.f32 %v30, %v177
  %v200 = vadd.f32 %v31, %v182
  %v201 = vadd.f32 %v32, %v185
  %v202 = vadd.f32 %v33, %v190
  %v203 = vadd.f32 %v34, %v193
  %204 = vst [vmem:[%s3] sm:$0xff] %v196
  %205 = vst [vmem:[%s3 + $0x8] sm:$0xff] %v197
  %206 = vst [vmem:[%s3 + $0x10] sm:$0xff] %v198
  %207 = vst [vmem:[%s3 + $0x18] sm:$0xff] %v199
  %208 = vst [vmem:[%s3 + $0x20] sm:$0xff] %v200
  %209 = vst [vmem:[%s3 + $0x28] sm:$0xff] %v201
  %210 = vst [vmem:[%s3 + $0x30] sm:$0xff] %v202
  %211 = vst [vmem:[%s3 + $0x38] sm:$0xff] %v203
  // Predicated region
  $region18: #{egl_rgcn_model_layer1_forward.1} parent=0 // pred_check
    %p212 = pneg %p15
  $region19: #{egl_rgcn_model_layer1_forward.1} parent=0 // pred_check_branch
    %214 = sbr.rel (%p212) target = $region21
  $region20: #{egl_rgcn_model_layer1_forward.1} parent=0 // pred_region
    %v215 = vld [vmem:[%s3] sm:$0xff]
    %v216 = vld [vmem:[%s3 + $0x8] sm:$0xff]
    %v217 = vld [vmem:[%s3 + $0x10] sm:$0xff]
    %v218 = vld [vmem:[%s3 + $0x18] sm:$0xff]
    %v219 = vld [vmem:[%s3 + $0x20] sm:$0xff]
    %v220 = vld [vmem:[%s3 + $0x28] sm:$0xff]
    %v221 = vld [vmem:[%s3 + $0x30] sm:$0xff]
    %v222 = vld [vmem:[%s3 + $0x38] sm:$0xff]
    %v223 = vld [vmem:[%s2] sm:$0x1]
    %v225 = vlaneseq
    %v226 = vshrl.u32 %v225, 7
    %v227 = vsub.s32 0, %v226
    %v228 = vrot.slane %v223, %v227
    %v230 = vadd.f32 %v215, %v228
    %v231 = vadd.f32 %v216, %v228
    %v232 = vadd.f32 %v217, %v228
    %v233 = vadd.f32 %v218, %v228
    %v234 = vadd.f32 %v219, %v228
    %v235 = vadd.f32 %v220, %v228
    %v236 = vadd.f32 %v221, %v228
    %v237 = vadd.f32 %v222, %v228
    %v238 = vmax.f32 %v230, 0.0
    %v239 = vmax.f32 %v231, 0.0
    %v240 = vmax.f32 %v232, 0.0
    %v241 = vmax.f32 %v233, 0.0
    %v242 = vmax.f32 %v234, 0.0
    %v243 = vmax.f32 %v235, 0.0
    %v244 = vmax.f32 %v236, 0.0
    %v245 = vmax.f32 %v237, 0.0
    %246 = vst [vmem:[%s3] sm:$0xff] %v238
    %247 = vst [vmem:[%s3 + $0x8] sm:$0xff] %v239
    %248 = vst [vmem:[%s3 + $0x10] sm:$0xff] %v240
    %249 = vst [vmem:[%s3 + $0x18] sm:$0xff] %v241
    %250 = vst [vmem:[%s3 + $0x20] sm:$0xff] %v242
    %251 = vst [vmem:[%s3 + $0x28] sm:$0xff] %v243
    %252 = vst [vmem:[%s3 + $0x30] sm:$0xff] %v244
    %253 = vst [vmem:[%s3 + $0x38] sm:$0xff] %v245
  $region21: #{egl_rgcn_model_layer1_forward.1} parent=0 // pred_fallthru
    _
  // Predicated region
  $region22: #{egl_rgcn_model_layer1_forward.1} parent=0 // pred_check
    _
  $region23: #{egl_rgcn_model_layer1_forward.1} parent=0 // pred_check_branch
    %255 = sbr.rel (0) target = $region25
  $region24: #{egl_rgcn_model_layer1_forward.1} parent=0 // pred_region
    _
  $region25: #{egl_rgcn_model_layer1_forward.1} parent=0 // pred_fallthru
    _
  // Predicated region
  $region26: #{egl_rgcn_model_layer1_forward.1} parent=0 // pred_check
    _
  $region27: #{egl_rgcn_model_layer1_forward.1} parent=0 // pred_check_branch
    %257 = sbr.rel (0) target = $region29
  $region28: #{egl_rgcn_model_layer1_forward.1} parent=0 // pred_region
    _
  $region29: #{egl_rgcn_model_layer1_forward.1} parent=0 // pred_fallthru
    _

</llo_original>
